<compile_context>
chip_gen: v6e
topology: v6e:2x2x1
jax: 0.10.0
libtpu: 0.0.40
codegen_flags: <defaults>
</compile_context>

<pallas_src>
import functools

import jax
import jax.numpy as jnp
from jax.experimental import pallas as pl
from jax.experimental.pallas import tpu as pltpu

_EPS = 1e-8      # nn.CosineSimilarity default eps
_LANE = 128


def _loss_kernel(sign_ref, pre_ref, *refs, num_classes, inv_count):
    # refs = [sal_0 .. sal_{C-1}, out_ref, acc_dot, acc_sal, acc_pre]
    sal_refs = refs[:num_classes]
    out_ref = refs[num_classes]
    acc_dot, acc_sal, acc_pre = refs[num_classes + 1:]

    f = pl.program_id(0)
    last = pl.num_programs(0) - 1

    @pl.when(f == 0)
    def _():
        acc_dot[...] = jnp.zeros_like(acc_dot)
        acc_sal[...] = jnp.zeros_like(acc_sal)
        acc_pre[...] = jnp.zeros_like(acc_pre)

    # Load the pre-logits tile once per F step; class-invariant norm hoisted.
    pre = pre_ref[...].astype(jnp.float32)                              # (B, Ft)
    acc_pre[...] += jnp.sum(pre * pre, axis=-1, keepdims=True)          # (B, 1)

    # Unrolled class loop: every class re-uses the already-loaded `pre` tile.
    for i in range(num_classes):
        sal = sal_refs[i][...].astype(jnp.float32)                      # (B, Ft)
        acc_dot[:, pl.ds(i, 1)] += jnp.sum(sal * pre, axis=-1, keepdims=True)
        acc_sal[:, pl.ds(i, 1)] += jnp.sum(sal * sal, axis=-1, keepdims=True)

    # Finalize on the last F tile: cos, sign, abs, mean -- all fused in-kernel.
    @pl.when(f == last)
    def _():
        # torch.nn.CosineSimilarity clamps each norm individually.
        n_sal = jnp.maximum(jnp.sqrt(acc_sal[...]), _EPS)               # (B, C)
        n_pre = jnp.maximum(jnp.sqrt(acc_pre[...]), _EPS)               # (B, 1)
        cos = acc_dot[...] / (n_sal * n_pre)                            # (B, C)
        total = jnp.sum(sign_ref[...] * jnp.abs(cos), keepdims=True)    # (1, 1)
        out_ref[...] = total * inv_count                                # mean over C*B


def prelogits_saliency_sim_loss(sal_tensor_list, pre_logits, label, *,
                                max_f_tile=2048):
    """JAX/Pallas equivalent of PrelogitsSaliencySimLoss.forward."""
    C = len(sal_tensor_list)
    B = pre_logits.shape[0]

    # Free reshapes only; keep native dtype (no f32 upcast in HBM).
    pre = pre_logits.reshape(B, -1)
    F = pre.shape[1]
    sals = [s.reshape(B, -1) for s in sal_tensor_list]
    for s in sals:
        assert s.shape == (B, F), "saliency feature size must match pre_logits"

    # F tiling: single full-F block when small (full-dim block bypasses the
    # (8,128) rule), otherwise 128-aligned tiles with exact zero padding.
    assert max_f_tile % _LANE == 0
    if F <= max_f_tile:
        f_tile, f_pad, num_f = F, F, 1
    else:
        f_tile = max_f_tile
        num_f = pl.cdiv(F, f_tile)
        f_pad = num_f * f_tile
    if f_pad != F:
        pad = ((0, 0), (0, f_pad - F))   # zeros: exact for dot and norms
        pre = jnp.pad(pre, pad)
        sals = [jnp.pad(s, pad) for s in sals]

    # sign[b, i] = +1 if label[b] != i else -1   (precomputed, tiny resident input)
    classes = jnp.arange(C, dtype=jnp.int32)
    sign = ((label.reshape(B, 1).astype(jnp.int32) != classes[None, :])
            .astype(jnp.float32) * 2.0 - 1.0)                            # (B, C)

    kernel = functools.partial(
        _loss_kernel, num_classes=C, inv_count=1.0 / float(C * B))

    data_spec = pl.BlockSpec((B, f_tile), lambda f: (0, f))

    out = pl.pallas_call(
        kernel,
        out_shape=jax.ShapeDtypeStruct((1, 1), jnp.float32),
        grid_spec=pltpu.PrefetchScalarGridSpec(
            num_scalar_prefetch=0,
            grid=(num_f,),
            in_specs=[pl.BlockSpec((B, C), lambda f: (0, 0))]   # sign (resident)
                     + [data_spec]                              # pre-logits tile
                     + [data_spec] * C,                         # per-class saliency tiles
            out_specs=pl.BlockSpec((1, 1), lambda f: (0, 0)),
            scratch_shapes=[
                pltpu.VMEM((B, C), jnp.float32),   # per-class dot partials
                pltpu.VMEM((B, C), jnp.float32),   # per-class ||sal||^2 partials
                pltpu.VMEM((B, 1), jnp.float32),   # ||pre||^2 partials (hoisted)
            ],
        ),
        compiler_params=pltpu.CompilerParams(
            dimension_semantics=("arbitrary",),    # F is a carried reduction axis
        ),
    )(sign, pre, *sals)
    return out[0, 0]


def _reference(sal_tensor_list, pre_logits, label):
    """Plain-JAX reference mirroring the PyTorch forward (per-norm eps clamp)."""
    B = pre_logits.shape[0]
    pre = pre_logits.reshape(B, -1).astype(jnp.float32)
    n_pre = jnp.maximum(jnp.linalg.norm(pre, axis=1), _EPS)
    vals = []
    for i, s in enumerate(sal_tensor_list):
        sv = s.reshape(B, -1).astype(jnp.float32)
        n_sal = jnp.maximum(jnp.linalg.norm(sv, axis=1), _EPS)
        cos = jnp.sum(sv * pre, axis=1) / (n_sal * n_pre)
        sign = (label != i).astype(jnp.float32) * 2.0 - 1.0
        vals.append(sign * jnp.abs(cos))
    return jnp.mean(jnp.concatenate(vals))


if __name__ == "__main__":
    key = jax.random.PRNGKey(0)
    B, NUM_CLASSES, H, W = 2, 4, 16, 16
    FEAT = H * W  # pre_logits feature dim must match flattened saliency size

    keys = jax.random.split(key, NUM_CLASSES + 2)
    sal_tensor_list = [
        jax.random.normal(keys[i], (B, 1, H, W), dtype=jnp.float32)
        for i in range(NUM_CLASSES)
    ]
    pre_logits = jax.random.normal(keys[NUM_CLASSES], (B, FEAT), dtype=jnp.float32)
    label = jax.random.randint(keys[NUM_CLASSES + 1], (B,), 0, NUM_CLASSES)

    ref = _reference(sal_tensor_list, pre_logits, label)

    # Single-tile path (whole F in one grid step).
    loss = prelogits_saliency_sim_loss(sal_tensor_list, pre_logits, label)
    loss = jax.block_until_ready(loss)
    assert jnp.allclose(loss, ref, atol=1e-5, rtol=1e-5), (loss, ref)

    # Multi-tile path (forces F tiling / cross-step accumulation) on same data.
    loss_tiled = prelogits_saliency_sim_loss(
        sal_tensor_list, pre_logits, label, max_f_tile=128)
    loss_tiled = jax.block_until_ready(loss_tiled)
    assert jnp.allclose(loss_tiled, ref, atol=1e-5, rtol=1e-5), (loss_tiled, ref)

    print("KERNEL_OK")
</pallas_src>

<mosaic_0001>
module attributes {stable_mosaic.version = 11 : i64} {
  func.func @_loss_kernel(%arg0: i32, %arg1: memref<2x4xf32, #tpu.memory_space<vmem>>, %arg2: memref<2x256xf32, #tpu.memory_space<vmem>>, %arg3: memref<2x256xf32, #tpu.memory_space<vmem>>, %arg4: memref<2x256xf32, #tpu.memory_space<vmem>>, %arg5: memref<2x256xf32, #tpu.memory_space<vmem>>, %arg6: memref<2x256xf32, #tpu.memory_space<vmem>>, %arg7: memref<1x1xf32, #tpu.memory_space<vmem>>, %arg8: memref<2x4xf32, #tpu.memory_space<vmem>>, %arg9: memref<2x4xf32, #tpu.memory_space<vmem>>, %arg10: memref<2x1xf32, #tpu.memory_space<vmem>>) attributes {dimension_semantics = [#tpu.dimension_semantics<arbitrary>], iteration_bounds = array<i64: 1>, scalar_prefetch = 0 : i64, scratch_operands = 3 : i64, tpu.core_type = #tpu.core_type<tc>, window_params = [{pipeline_mode = #tpu.pipeline_mode<synchronous>, transform_indices = @transform_0, window_bounds = array<i64: 2, 4>}, {transform_indices = @transform_1, window_bounds = array<i64: 2, 256>}, {transform_indices = @transform_2, window_bounds = array<i64: 2, 256>}, {transform_indices = @transform_3, window_bounds = array<i64: 2, 256>}, {transform_indices = @transform_4, window_bounds = array<i64: 2, 256>}, {transform_indices = @transform_5, window_bounds = array<i64: 2, 256>}, {pipeline_mode = #tpu.pipeline_mode<synchronous>, transform_indices = @transform_6, window_bounds = array<i64: 1, 1>}]} {
    %c0_i32 = arith.constant 0 : i32
    %0 = arith.cmpi eq, %arg0, %c0_i32 : i32
    %1 = arith.extui %0 : i1 to i32
    %c0_i32_0 = arith.constant 0 : i32
    %2 = arith.cmpi ne, %1, %c0_i32_0 : i32
    scf.if %2 {
      %cst_53 = arith.constant 0.000000e+00 : f32
      %65 = vector.broadcast %cst_53 : f32 to vector<2x4xf32>
      %c0_54 = arith.constant 0 : index
      %c0_55 = arith.constant 0 : index
      %66 = vector.load %arg8[%c0_54, %c0_55] : memref<2x4xf32, #tpu.memory_space<vmem>>, vector<2x4xf32>
      tpu.vector_store %arg8[%c0_54, %c0_55], %65 {strides = array<i32>} : memref<2x4xf32, #tpu.memory_space<vmem>>, vector<2x4xf32>,
      %cst_56 = arith.constant 0.000000e+00 : f32
      %67 = vector.broadcast %cst_56 : f32 to vector<2x4xf32>
      %c0_57 = arith.constant 0 : index
      %c0_58 = arith.constant 0 : index
      %68 = vector.load %arg9[%c0_57, %c0_58] : memref<2x4xf32, #tpu.memory_space<vmem>>, vector<2x4xf32>
      tpu.vector_store %arg9[%c0_57, %c0_58], %67 {strides = array<i32>} : memref<2x4xf32, #tpu.memory_space<vmem>>, vector<2x4xf32>,
      %cst_59 = arith.constant 0.000000e+00 : f32
      %69 = vector.broadcast %cst_59 : f32 to vector<2x1xf32>
      %c0_60 = arith.constant 0 : index
      %c0_61 = arith.constant 0 : index
      %70 = vector.load %arg10[%c0_60, %c0_61] : memref<2x1xf32, #tpu.memory_space<vmem>>, vector<2x1xf32>
      tpu.vector_store %arg10[%c0_60, %c0_61], %69 {strides = array<i32>} : memref<2x1xf32, #tpu.memory_space<vmem>>, vector<2x1xf32>,
    } else {
    }
    %c0 = arith.constant 0 : index
    %c0_1 = arith.constant 0 : index
    %3 = vector.load %arg2[%c0, %c0_1] : memref<2x256xf32, #tpu.memory_space<vmem>>, vector<2x256xf32>
    %c0_2 = arith.constant 0 : index
    %c0_3 = arith.constant 0 : index
    %4 = vector.load %arg10[%c0_2, %c0_3] : memref<2x1xf32, #tpu.memory_space<vmem>>, vector<2x1xf32>
    %5 = arith.mulf %3, %3 : vector<2x256xf32>
    %cst = arith.constant dense<0.000000e+00> : vector<2xf32>
    %6 = vector.multi_reduction <add>, %5, %cst [1] : vector<2x256xf32> to vector<2xf32>
    %7 = vector.shape_cast %6 : vector<2xf32> to vector<2x1xf32>
    %8 = arith.addf %4, %7 : vector<2x1xf32>
    %c0_4 = arith.constant 0 : index
    %c0_5 = arith.constant 0 : index
    %9 = vector.load %arg10[%c0_4, %c0_5] : memref<2x1xf32, #tpu.memory_space<vmem>>, vector<2x1xf32>
    tpu.vector_store %arg10[%c0_4, %c0_5], %8 {strides = array<i32>} : memref<2x1xf32, #tpu.memory_space<vmem>>, vector<2x1xf32>,
    %c0_6 = arith.constant 0 : index
    %c0_7 = arith.constant 0 : index
    %10 = vector.load %arg3[%c0_6, %c0_7] : memref<2x256xf32, #tpu.memory_space<vmem>>, vector<2x256xf32>
    %c0_8 = arith.constant 0 : index
    %c0_9 = arith.constant 0 : index
    %11 = vector.load %arg8[%c0_8, %c0_9] : memref<2x4xf32, #tpu.memory_space<vmem>>, vector<2x1xf32>
    %12 = arith.mulf %10, %3 : vector<2x256xf32>
    %cst_10 = arith.constant dense<0.000000e+00> : vector<2xf32>
    %13 = vector.multi_reduction <add>, %12, %cst_10 [1] : vector<2x256xf32> to vector<2xf32>
    %14 = vector.shape_cast %13 : vector<2xf32> to vector<2x1xf32>
    %15 = arith.addf %11, %14 : vector<2x1xf32>
    %c0_11 = arith.constant 0 : index
    %c0_12 = arith.constant 0 : index
    %16 = vector.load %arg8[%c0_11, %c0_12] : memref<2x4xf32, #tpu.memory_space<vmem>>, vector<2x1xf32>
    tpu.vector_store %arg8[%c0_11, %c0_12], %15 {strides = array<i32>} : memref<2x4xf32, #tpu.memory_space<vmem>>, vector<2x1xf32>,
    %c0_13 = arith.constant 0 : index
    %c0_14 = arith.constant 0 : index
    %17 = vector.load %arg9[%c0_13, %c0_14] : memref<2x4xf32, #tpu.memory_space<vmem>>, vector<2x1xf32>
    %18 = arith.mulf %10, %10 : vector<2x256xf32>
    %cst_15 = arith.constant dense<0.000000e+00> : vector<2xf32>
    %19 = vector.multi_reduction <add>, %18, %cst_15 [1] : vector<2x256xf32> to vector<2xf32>
    %20 = vector.shape_cast %19 : vector<2xf32> to vector<2x1xf32>
    %21 = arith.addf %17, %20 : vector<2x1xf32>
    %c0_16 = arith.constant 0 : index
    %c0_17 = arith.constant 0 : index
    %22 = vector.load %arg9[%c0_16, %c0_17] : memref<2x4xf32, #tpu.memory_space<vmem>>, vector<2x1xf32>
    tpu.vector_store %arg9[%c0_16, %c0_17], %21 {strides = array<i32>} : memref<2x4xf32, #tpu.memory_space<vmem>>, vector<2x1xf32>,
    %c0_18 = arith.constant 0 : index
    %c0_19 = arith.constant 0 : index
    %23 = vector.load %arg4[%c0_18, %c0_19] : memref<2x256xf32, #tpu.memory_space<vmem>>, vector<2x256xf32>
    %c0_20 = arith.constant 0 : index
    %c1 = arith.constant 1 : index
    %24 = vector.load %arg8[%c0_20, %c1] : memref<2x4xf32, #tpu.memory_space<vmem>>, vector<2x1xf32>
    %25 = arith.mulf %23, %3 : vector<2x256xf32>
    %cst_21 = arith.constant dense<0.000000e+00> : vector<2xf32>
    %26 = vector.multi_reduction <add>, %25, %cst_21 [1] : vector<2x256xf32> to vector<2xf32>
    %27 = vector.shape_cast %26 : vector<2xf32> to vector<2x1xf32>
    %28 = arith.addf %24, %27 : vector<2x1xf32>
    %c0_22 = arith.constant 0 : index
    %c1_23 = arith.constant 1 : index
    %29 = vector.load %arg8[%c0_22, %c1_23] : memref<2x4xf32, #tpu.memory_space<vmem>>, vector<2x1xf32>
    tpu.vector_store %arg8[%c0_22, %c1_23], %28 {strides = array<i32>} : memref<2x4xf32, #tpu.memory_space<vmem>>, vector<2x1xf32>,
    %c0_24 = arith.constant 0 : index
    %c1_25 = arith.constant 1 : index
    %30 = vector.load %arg9[%c0_24, %c1_25] : memref<2x4xf32, #tpu.memory_space<vmem>>, vector<2x1xf32>
    %31 = arith.mulf %23, %23 : vector<2x256xf32>
    %cst_26 = arith.constant dense<0.000000e+00> : vector<2xf32>
    %32 = vector.multi_reduction <add>, %31, %cst_26 [1] : vector<2x256xf32> to vector<2xf32>
    %33 = vector.shape_cast %32 : vector<2xf32> to vector<2x1xf32>
    %34 = arith.addf %30, %33 : vector<2x1xf32>
    %c0_27 = arith.constant 0 : index
    %c1_28 = arith.constant 1 : index
    %35 = vector.load %arg9[%c0_27, %c1_28] : memref<2x4xf32, #tpu.memory_space<vmem>>, vector<2x1xf32>
    tpu.vector_store %arg9[%c0_27, %c1_28], %34 {strides = array<i32>} : memref<2x4xf32, #tpu.memory_space<vmem>>, vector<2x1xf32>,
    %c0_29 = arith.constant 0 : index
    %c0_30 = arith.constant 0 : index
    %36 = vector.load %arg5[%c0_29, %c0_30] : memref<2x256xf32, #tpu.memory_space<vmem>>, vector<2x256xf32>
    %c0_31 = arith.constant 0 : index
    %c2 = arith.constant 2 : index
    %37 = vector.load %arg8[%c0_31, %c2] : memref<2x4xf32, #tpu.memory_space<vmem>>, vector<2x1xf32>
    %38 = arith.mulf %36, %3 : vector<2x256xf32>
    %cst_32 = arith.constant dense<0.000000e+00> : vector<2xf32>
    %39 = vector.multi_reduction <add>, %38, %cst_32 [1] : vector<2x256xf32> to vector<2xf32>
    %40 = vector.shape_cast %39 : vector<2xf32> to vector<2x1xf32>
    %41 = arith.addf %37, %40 : vector<2x1xf32>
    %c0_33 = arith.constant 0 : index
    %c2_34 = arith.constant 2 : index
    %42 = vector.load %arg8[%c0_33, %c2_34] : memref<2x4xf32, #tpu.memory_space<vmem>>, vector<2x1xf32>
    tpu.vector_store %arg8[%c0_33, %c2_34], %41 {strides = array<i32>} : memref<2x4xf32, #tpu.memory_space<vmem>>, vector<2x1xf32>,
    %c0_35 = arith.constant 0 : index
    %c2_36 = arith.constant 2 : index
    %43 = vector.load %arg9[%c0_35, %c2_36] : memref<2x4xf32, #tpu.memory_space<vmem>>, vector<2x1xf32>
    %44 = arith.mulf %36, %36 : vector<2x256xf32>
    %cst_37 = arith.constant dense<0.000000e+00> : vector<2xf32>
    %45 = vector.multi_reduction <add>, %44, %cst_37 [1] : vector<2x256xf32> to vector<2xf32>
    %46 = vector.shape_cast %45 : vector<2xf32> to vector<2x1xf32>
    %47 = arith.addf %43, %46 : vector<2x1xf32>
    %c0_38 = arith.constant 0 : index
    %c2_39 = arith.constant 2 : index
    %48 = vector.load %arg9[%c0_38, %c2_39] : memref<2x4xf32, #tpu.memory_space<vmem>>, vector<2x1xf32>
    tpu.vector_store %arg9[%c0_38, %c2_39], %47 {strides = array<i32>} : memref<2x4xf32, #tpu.memory_space<vmem>>, vector<2x1xf32>,
    %c0_40 = arith.constant 0 : index
    %c0_41 = arith.constant 0 : index
    %49 = vector.load %arg6[%c0_40, %c0_41] : memref<2x256xf32, #tpu.memory_space<vmem>>, vector<2x256xf32>
    %c0_42 = arith.constant 0 : index
    %c3 = arith.constant 3 : index
    %50 = vector.load %arg8[%c0_42, %c3] : memref<2x4xf32, #tpu.memory_space<vmem>>, vector<2x1xf32>
    %51 = arith.mulf %49, %3 : vector<2x256xf32>
    %cst_43 = arith.constant dense<0.000000e+00> : vector<2xf32>
    %52 = vector.multi_reduction <add>, %51, %cst_43 [1] : vector<2x256xf32> to vector<2xf32>
    %53 = vector.shape_cast %52 : vector<2xf32> to vector<2x1xf32>
    %54 = arith.addf %50, %53 : vector<2x1xf32>
    %c0_44 = arith.constant 0 : index
    %c3_45 = arith.constant 3 : index
    %55 = vector.load %arg8[%c0_44, %c3_45] : memref<2x4xf32, #tpu.memory_space<vmem>>, vector<2x1xf32>
    tpu.vector_store %arg8[%c0_44, %c3_45], %54 {strides = array<i32>} : memref<2x4xf32, #tpu.memory_space<vmem>>, vector<2x1xf32>,
    %c0_46 = arith.constant 0 : index
    %c3_47 = arith.constant 3 : index
    %56 = vector.load %arg9[%c0_46, %c3_47] : memref<2x4xf32, #tpu.memory_space<vmem>>, vector<2x1xf32>
    %57 = arith.mulf %49, %49 : vector<2x256xf32>
    %cst_48 = arith.constant dense<0.000000e+00> : vector<2xf32>
    %58 = vector.multi_reduction <add>, %57, %cst_48 [1] : vector<2x256xf32> to vector<2xf32>
    %59 = vector.shape_cast %58 : vector<2xf32> to vector<2x1xf32>
    %60 = arith.addf %56, %59 : vector<2x1xf32>
    %c0_49 = arith.constant 0 : index
    %c3_50 = arith.constant 3 : index
    %61 = vector.load %arg9[%c0_49, %c3_50] : memref<2x4xf32, #tpu.memory_space<vmem>>, vector<2x1xf32>
    tpu.vector_store %arg9[%c0_49, %c3_50], %60 {strides = array<i32>} : memref<2x4xf32, #tpu.memory_space<vmem>>, vector<2x1xf32>,
    %c0_i32_51 = arith.constant 0 : i32
    %62 = arith.cmpi eq, %arg0, %c0_i32_51 : i32
    %63 = arith.extui %62 : i1 to i32
    %c0_i32_52 = arith.constant 0 : i32
    %64 = arith.cmpi ne, %63, %c0_i32_52 : i32
    scf.if %64 {
      %c0_53 = arith.constant 0 : index
      %c0_54 = arith.constant 0 : index
      %65 = vector.load %arg9[%c0_53, %c0_54] : memref<2x4xf32, #tpu.memory_space<vmem>>, vector<2x4xf32>
      %66 = math.sqrt %65 : vector<2x4xf32>
      %cst_55 = arith.constant 9.99999993E-9 : f32
      %67 = vector.broadcast %cst_55 : f32 to vector<2x4xf32>
      %68 = arith.maximumf %66, %67 : vector<2x4xf32>
      %c0_56 = arith.constant 0 : index
      %c0_57 = arith.constant 0 : index
      %69 = vector.load %arg10[%c0_56, %c0_57] : memref<2x1xf32, #tpu.memory_space<vmem>>, vector<2x1xf32>
      %70 = math.sqrt %69 : vector<2x1xf32>
      %cst_58 = arith.constant 9.99999993E-9 : f32
      %71 = vector.broadcast %cst_58 : f32 to vector<2x1xf32>
      %72 = arith.maximumf %70, %71 : vector<2x1xf32>
      %c0_59 = arith.constant 0 : index
      %c0_60 = arith.constant 0 : index
      %73 = vector.load %arg8[%c0_59, %c0_60] : memref<2x4xf32, #tpu.memory_space<vmem>>, vector<2x4xf32>
      %74 = vector.broadcast %72 : vector<2x1xf32> to vector<2x4xf32>
      %75 = arith.mulf %68, %74 : vector<2x4xf32>
      %76 = arith.divf %73, %75 : vector<2x4xf32>
      %c0_61 = arith.constant 0 : index
      %c0_62 = arith.constant 0 : index
      %77 = vector.load %arg1[%c0_61, %c0_62] : memref<2x4xf32, #tpu.memory_space<vmem>>, vector<2x4xf32>
      %78 = math.absf %76 : vector<2x4xf32>
      %79 = arith.mulf %77, %78 : vector<2x4xf32>
      %80 = vector.shape_cast %79 : vector<2x4xf32> to vector<1x2x4xf32>
      %cst_63 = arith.constant dense<0.000000e+00> : vector<1xf32>
      %81 = vector.multi_reduction <add>, %80, %cst_63 [1, 2] : vector<1x2x4xf32> to vector<1xf32>
      %82 = vector.shape_cast %81 : vector<1xf32> to vector<1x1x1xf32>
      %83 = vector.extract %82[0, 0, 0] : f32 from vector<1x1x1xf32>
      %84 = vector.broadcast %83 : f32 to vector<1x1xf32>
      %cst_64 = arith.constant 1.250000e-01 : f32
      %85 = vector.broadcast %cst_64 : f32 to vector<1x1xf32>
      %86 = arith.mulf %84, %85 : vector<1x1xf32>
      %c0_65 = arith.constant 0 : index
      %c0_66 = arith.constant 0 : index
      %87 = vector.load %arg7[%c0_65, %c0_66] : memref<1x1xf32, #tpu.memory_space<vmem>>, vector<1x1xf32>
      tpu.vector_store %arg7[%c0_65, %c0_66], %86 {strides = array<i32>} : memref<1x1xf32, #tpu.memory_space<vmem>>, vector<1x1xf32>,
    } else {
    }
    return
  }
  func.func @transform_0(%arg0: i32) -> (i32, i32) {
    %c0_i32 = arith.constant 0 : i32
    %c0_i32_0 = arith.constant 0 : i32
    %c0_i32_1 = arith.constant 0 : i32
    return %c0_i32, %c0_i32_0 : i32, i32
  }
  func.func @transform_1(%arg0: i32) -> (i32, i32) {
    %c0_i32 = arith.constant 0 : i32
    %c0_i32_0 = arith.constant 0 : i32
    return %c0_i32, %arg0 : i32, i32
  }
  func.func @transform_2(%arg0: i32) -> (i32, i32) {
    %c0_i32 = arith.constant 0 : i32
    %c0_i32_0 = arith.constant 0 : i32
    return %c0_i32, %arg0 : i32, i32
  }
  func.func @transform_3(%arg0: i32) -> (i32, i32) {
    %c0_i32 = arith.constant 0 : i32
    %c0_i32_0 = arith.constant 0 : i32
    return %c0_i32, %arg0 : i32, i32
  }
  func.func @transform_4(%arg0: i32) -> (i32, i32) {
    %c0_i32 = arith.constant 0 : i32
    %c0_i32_0 = arith.constant 0 : i32
    return %c0_i32, %arg0 : i32, i32
  }
  func.func @transform_5(%arg0: i32) -> (i32, i32) {
    %c0_i32 = arith.constant 0 : i32
    %c0_i32_0 = arith.constant 0 : i32
    return %c0_i32, %arg0 : i32, i32
  }
  func.func @transform_6(%arg0: i32) -> (i32, i32) {
    %c0_i32 = arith.constant 0 : i32
    %c0_i32_0 = arith.constant 0 : i32
    %c0_i32_1 = arith.constant 0 : i32
    return %c0_i32, %c0_i32_0 : i32, i32
  }
}

</mosaic_0001>

<llo_original>
// kernel: tpu_custom_call.1
$region0: #{tpu_custom_call.1}
  #allocation0 [shape = 'u32[]', space=smem, size = 0x4, offset = 0x4, fixed_abs, tag = 'smem constant byte address 0x4 - core index']
  #allocation1 [shape = 'u32[144,128]{1,0:T(1,128)}', space=vmem, size = 0x12000, scoped, tag = 'internal scratch']
  #allocation2 [shape = 'f32[2,4]{1,0:T(2,128)}', space=vmem, size = 0x400, scoped, tag = 'scratch operand']
  #allocation3 [shape = 'f32[2,4]{1,0:T(2,128)}', space=vmem, size = 0x400, scoped, tag = 'scratch operand']
  #allocation4 [shape = 'f32[2,1]{1,0:T(2,128)}', space=vmem, size = 0x400, scoped, tag = 'scratch operand']
  %s0 = inlined_call_operand.hbm [shape: f32[2,4], index: 0, kind: input, shape index: {}]
  %s1 = inlined_call_operand.hbm [shape: f32[2,256], index: 1, kind: input, shape index: {}]
  %s2 = inlined_call_operand.hbm [shape: f32[2,256], index: 2, kind: input, shape index: {}]
  %s3 = inlined_call_operand.vmem [shape: f32[2,256], index: 3, kind: input, shape index: {}]
  %s4 = inlined_call_operand.hbm [shape: f32[2,256], index: 4, kind: input, shape index: {}]
  %s5 = inlined_call_operand.vmem [shape: f32[2,256], index: 5, kind: input, shape index: {}]
  %s6 = inlined_call_operand.hbm [shape: f32[1,1], index: 6, kind: output, shape index: {}]
  %s7 = sld [smem:[#allocation0]]
  $region58: #{tpu_custom_call.1} parent=0
    _
  %s9 = ssub.s32 1, %s7
  %s10 = scalar_select 0, %s9, %s7
  $region1: #{tpu_custom_call.1} parent=0
    #allocation5 [shape = 'u8[1024]{0}', space=vmem, size = 0x400, scoped, tag = 'input window, operand 0, single buffered']
    #allocation6 [shape = 's32[1]{0}', space=sflag, size = 0x4, scoped, tag = 'scoped memory for tpu_custom_call.1']
    #allocation7 [shape = 's32[1]{0}', space=sflag, size = 0x4, scoped, tag = 'scoped memory for tpu_custom_call.1']
    #allocation8 [shape = 'u8[2048]{0}', space=vmem, size = 0x800, scoped, tag = 'input window, operand 1, single buffered']
    #allocation9 [shape = 's32[1]{0}', space=sflag, size = 0x4, scoped, tag = 'scoped memory for tpu_custom_call.1']
    #allocation10 [shape = 'u8[2048]{0}', space=vmem, size = 0x800, scoped, tag = 'input window, operand 2, single buffered']
    #allocation11 [shape = 'u8[2048]{0}', space=vmem, size = 0x800, scoped, tag = 'input window, operand 4, single buffered']
    #allocation12 [shape = 's32[1]{0}', space=sflag, size = 0x4, scoped, tag = 'scoped memory for tpu_custom_call.1']
    #allocation13 [shape = 'u8[512]{0}', space=vmem, size = 0x400, scoped, tag = 'output window, operand 0, single buffered']
    %11 = vsyncpa [#allocation6], 0
    %12 = vsyncpa [#allocation9], 0
    %13 = vsyncpa [#allocation12], 0
    %14 = vsyncpa [#allocation7], 0
    // Predicated region
    $region2: #{tpu_custom_call.1} parent=1 // pred_check
      _
    $region3: #{tpu_custom_call.1} parent=1 // pred_check_branch
      %16 = sbr.rel (0) target = $region5
    $region4: #{tpu_custom_call.1} parent=1 // pred_region
      %s18 = ssub.s32 32, 32
      %19 = vsyncadd [#allocation6], %s18
      %s21 = sshll.u32 [#allocation5], 4
      %s22 = int_to_ptr.vmem [resolvable:$true] %s21
      %24 = dma.hbm_to_vmem [thread:$0]  %s0, 32, %s22, [#allocation6]
    $region5: #{tpu_custom_call.1} parent=1 // pred_fallthru
      _
    // Predicated region
    $region6: #{tpu_custom_call.1} parent=1 // pred_check
      _
    $region7: #{tpu_custom_call.1} parent=1 // pred_check_branch
      %26 = sbr.rel (0) target = $region9
    $region8: #{tpu_custom_call.1} parent=1 // pred_region
      %s28 = ssub.s32 64, 64
      %29 = vsyncadd [#allocation9], %s28
      %s31 = sshll.u32 [#allocation8], 4
      %s32 = int_to_ptr.vmem [resolvable:$true] %s31
      %34 = dma.hbm_to_vmem [thread:$0]  %s1, 64, %s32, [#allocation9]
    $region9: #{tpu_custom_call.1} parent=1 // pred_fallthru
      _
    // Predicated region
    $region10: #{tpu_custom_call.1} parent=1 // pred_check
      _
    $region11: #{tpu_custom_call.1} parent=1 // pred_check_branch
      %36 = sbr.rel (0) target = $region13
    $region12: #{tpu_custom_call.1} parent=1 // pred_region
      %s38 = ssub.s32 64, 64
      %39 = vsyncadd [#allocation9], %s38
      %s41 = sshll.u32 [#allocation10], 4
      %s42 = int_to_ptr.vmem [resolvable:$true] %s41
      %44 = dma.hbm_to_vmem [thread:$0]  %s2, 64, %s42, [#allocation9]
    $region13: #{tpu_custom_call.1} parent=1 // pred_fallthru
      _
    // Predicated region
    $region14: #{tpu_custom_call.1} parent=1 // pred_check
      _
    $region15: #{tpu_custom_call.1} parent=1 // pred_check_branch
      %46 = sbr.rel (0) target = $region17
    $region16: #{tpu_custom_call.1} parent=1 // pred_region
      _
    $region17: #{tpu_custom_call.1} parent=1 // pred_fallthru
      _
    // Predicated region
    $region18: #{tpu_custom_call.1} parent=1 // pred_check
      _
    $region19: #{tpu_custom_call.1} parent=1 // pred_check_branch
      %48 = sbr.rel (0) target = $region21
    $region20: #{tpu_custom_call.1} parent=1 // pred_region
      %s50 = ssub.s32 64, 64
      %51 = vsyncadd [#allocation12], %s50
      %s53 = sshll.u32 [#allocation11], 4
      %s54 = int_to_ptr.vmem [resolvable:$true] %s53
      %56 = dma.hbm_to_vmem [thread:$0]  %s4, 64, %s54, [#allocation12]
    $region21: #{tpu_custom_call.1} parent=1 // pred_fallthru
      _
    // Predicated region
    $region22: #{tpu_custom_call.1} parent=1 // pred_check
      _
    $region23: #{tpu_custom_call.1} parent=1 // pred_check_branch
      %58 = sbr.rel (0) target = $region25
    $region24: #{tpu_custom_call.1} parent=1 // pred_region
      _
    $region25: #{tpu_custom_call.1} parent=1 // pred_fallthru
      _
    // Predicated region
    $region26: #{tpu_custom_call.1} parent=1 // pred_check
      _
    $region27: #{tpu_custom_call.1} parent=1 // pred_check_branch
      %60 = sbr.rel (0) target = $region29
    $region28: #{tpu_custom_call.1} parent=1 // pred_region
      %61 = dma.done [#allocation6], 32
    $region29: #{tpu_custom_call.1} parent=1 // pred_fallthru
      _
    // Predicated region
    $region30: #{tpu_custom_call.1} parent=1 // pred_check
      _
    $region31: #{tpu_custom_call.1} parent=1 // pred_check_branch
      %63 = sbr.rel (0) target = $region33
    $region32: #{tpu_custom_call.1} parent=1 // pred_region
      %64 = dma.done [#allocation9], 64
    $region33: #{tpu_custom_call.1} parent=1 // pred_fallthru
      _
    // Predicated region
    $region34: #{tpu_custom_call.1} parent=1 // pred_check
      _
    $region35: #{tpu_custom_call.1} parent=1 // pred_check_branch
      %66 = sbr.rel (0) target = $region37
    $region36: #{tpu_custom_call.1} parent=1 // pred_region
      %67 = dma.done [#allocation9], 64
    $region37: #{tpu_custom_call.1} parent=1 // pred_fallthru
      _
    // Predicated region
    $region38: #{tpu_custom_call.1} parent=1 // pred_check
      _
    $region39: #{tpu_custom_call.1} parent=1 // pred_check_branch
      %69 = sbr.rel (0) target = $region41
    $region40: #{tpu_custom_call.1} parent=1 // pred_region
      %70 = dma.done [#allocation12], 64
    $region41: #{tpu_custom_call.1} parent=1 // pred_fallthru
      _
    %p71 = scmp.eq.s32.totalorder 0, 0
    // Predicated region
    $region42: #{tpu_custom_call.1} parent=1 // pred_check
      %p72 = pneg %p71
    $region43: #{tpu_custom_call.1} parent=1 // pred_check_branch
      %74 = sbr.rel (%p72) target = $region45
    $region44: #{tpu_custom_call.1} parent=1 // pred_region
      %vm75 = vcmask 25600
      %76 = vst.msk [vmem:[#allocation2] sm:$0x3] %vm75, 0.0
      %77 = vst.msk [vmem:[#allocation3] sm:$0x3] %vm75, 0.0
      %vm78 = vcmask 1024
      %79 = vst.msk [vmem:[#allocation4] sm:$0x3] %vm78, 0.0
    $region45: #{tpu_custom_call.1} parent=1 // pred_fallthru
      _
    %v80 = vld [vmem:[#allocation8] sm:$0xf]
    %v81 = vld [vmem:[#allocation4] sm:$0x3]
    %v82 = vmul.f32 %v80, %v80
    %v85 = vunpack.c.l.s4 1983009808
    %v86 = vunpack.c.0.s8 %v85
    %v87 = vlaneseq
    %v88 = vshrl.u32 %v87, 7
    %v89 = vsub.s32 %v86, %v88
    %v90 = vrot.slane %v82, %v89
    %v91 = vcombine.high %v90, %v90
    %vm94 = vcmask 1041408
    %v95 = vsel %vm94, %v90, 0.0
    %v96 = vsel %vm94, %v91, 0.0
    %v97 = vadd.f32 %v95, %v96
    %98 = vadd.xlane.f32.xlu0 %v97
    %v99 = vpop.xlane.xlu0 %98
    %v100 = vadd.f32 %v81, %v99
    %vm101 = vcmask 1024
    %102 = vst.msk [vmem:[#allocation4] sm:$0x3] %vm101, %v100
    %v103 = vld [vmem:[#allocation10] sm:$0xf]
    %v104 = vld [vmem:[#allocation2] sm:$0x3]
    %v105 = vmul.f32 %v103, %v80
    %v108 = vunpack.c.l.s4 1983009808
    %v109 = vunpack.c.0.s8 %v108
    %v110 = vlaneseq
    %v111 = vshrl.u32 %v110, 7
    %v112 = vsub.s32 %v109, %v111
    %v113 = vrot.slane %v105, %v112
    %v114 = vcombine.high %v113, %v113
    %v117 = vsel %vm94, %v113, 0.0
    %v118 = vsel %vm94, %v114, 0.0
    %v119 = vadd.f32 %v117, %v118
    %120 = vadd.xlane.f32.xlu0 %v119
    %v121 = vpop.xlane.xlu0 %120
    %v122 = vadd.f32 %v104, %v121
    %123 = vst.msk [vmem:[#allocation2] sm:$0x3] %vm101, %v122
    %v124 = vld [vmem:[#allocation3] sm:$0x3]
    %v125 = vmul.f32 %v103, %v103
    %v128 = vunpack.c.l.s4 1983009808
    %v129 = vunpack.c.0.s8 %v128
    %v130 = vlaneseq
    %v131 = vshrl.u32 %v130, 7
    %v132 = vsub.s32 %v129, %v131
    %v133 = vrot.slane %v125, %v132
    %v134 = vcombine.high %v133, %v133
    %v137 = vsel %vm94, %v133, 0.0
    %v138 = vsel %vm94, %v134, 0.0
    %v139 = vadd.f32 %v137, %v138
    %140 = vadd.xlane.f32.xlu0 %v139
    %v141 = vpop.xlane.xlu0 %140
    %v142 = vadd.f32 %v124, %v141
    %143 = vst.msk [vmem:[#allocation3] sm:$0x3] %vm101, %v142
    %v144 = vld [vmem:[%s3] sm:$0xf]
    %v145 = vld [vmem:[#allocation2] sm:$0x3]
    %v146 = vmul.f32 %v144, %v80
    %v149 = vunpack.c.l.s4 1983009808
    %v150 = vunpack.c.0.s8 %v149
    %v151 = vlaneseq
    %v152 = vshrl.u32 %v151, 7
    %v153 = vsub.s32 %v150, %v152
    %v154 = vrot.slane %v146, %v153
    %v155 = vcombine.high %v154, %v154
    %v158 = vsel %vm94, %v154, 0.0
    %v159 = vsel %vm94, %v155, 0.0
    %v160 = vadd.f32 %v158, %v159
    %161 = vadd.xlane.f32.xlu0 %v160
    %v162 = vpop.xlane.xlu0 %161
    %v163 = vadd.f32 %v145, %v162
    %vm164 = vcmask 9224
    %165 = vst.msk [vmem:[#allocation2] sm:$0x3] %vm164, %v163
    %v166 = vld [vmem:[#allocation3] sm:$0x3]
    %v167 = vmul.f32 %v144, %v144
    %v170 = vunpack.c.l.s4 1983009808
    %v171 = vunpack.c.0.s8 %v170
    %v172 = vlaneseq
    %v173 = vshrl.u32 %v172, 7
    %v174 = vsub.s32 %v171, %v173
    %v175 = vrot.slane %v167, %v174
    %v176 = vcombine.high %v175, %v175
    %v179 = vsel %vm94, %v175, 0.0
    %v180 = vsel %vm94, %v176, 0.0
    %v181 = vadd.f32 %v179, %v180
    %182 = vadd.xlane.f32.xlu0 %v181
    %v183 = vpop.xlane.xlu0 %182
    %v184 = vadd.f32 %v166, %v183
    %185 = vst.msk [vmem:[#allocation3] sm:$0x3] %vm164, %v184
    %v186 = vld [vmem:[#allocation11] sm:$0xf]
    %v187 = vld [vmem:[#allocation2] sm:$0x3]
    %v188 = vmul.f32 %v186, %v80
    %v191 = vunpack.c.l.s4 1983009808
    %v192 = vunpack.c.0.s8 %v191
    %v193 = vlaneseq
    %v194 = vshrl.u32 %v193, 7
    %v195 = vsub.s32 %v192, %v194
    %v196 = vrot.slane %v188, %v195
    %v197 = vcombine.high %v196, %v196
    %v200 = vsel %vm94, %v196, 0.0
    %v201 = vsel %vm94, %v197, 0.0
    %v202 = vadd.f32 %v200, %v201
    %203 = vadd.xlane.f32.xlu0 %v202
    %v204 = vpop.xlane.xlu0 %203
    %v205 = vadd.f32 %v187, %v204
    %vm206 = vcmask 17424
    %207 = vst.msk [vmem:[#allocation2] sm:$0x3] %vm206, %v205
    %v208 = vld [vmem:[#allocation3] sm:$0x3]
    %v209 = vmul.f32 %v186, %v186
    %v212 = vunpack.c.l.s4 1983009808
    %v213 = vunpack.c.0.s8 %v212
    %v214 = vlaneseq
    %v215 = vshrl.u32 %v214, 7
    %v216 = vsub.s32 %v213, %v215
    %v217 = vrot.slane %v209, %v216
    %v218 = vcombine.high %v217, %v217
    %v221 = vsel %vm94, %v217, 0.0
    %v222 = vsel %vm94, %v218, 0.0
    %v223 = vadd.f32 %v221, %v222
    %224 = vadd.xlane.f32.xlu0 %v223
    %v225 = vpop.xlane.xlu0 %224
    %v226 = vadd.f32 %v208, %v225
    %227 = vst.msk [vmem:[#allocation3] sm:$0x3] %vm206, %v226
    %v228 = vld [vmem:[%s5] sm:$0xf]
    %v229 = vld [vmem:[#allocation2] sm:$0x3]
    %v230 = vmul.f32 %v228, %v80
    %v233 = vunpack.c.l.s4 1983009808
    %v234 = vunpack.c.0.s8 %v233
    %v235 = vlaneseq
    %v236 = vshrl.u32 %v235, 7
    %v237 = vsub.s32 %v234, %v236
    %v238 = vrot.slane %v230, %v237
    %v239 = vcombine.high %v238, %v238
    %v242 = vsel %vm94, %v238, 0.0
    %v243 = vsel %vm94, %v239, 0.0
    %v244 = vadd.f32 %v242, %v243
    %245 = vadd.xlane.f32.xlu0 %v244
    %v246 = vpop.xlane.xlu0 %245
    %v247 = vadd.f32 %v229, %v246
    %vm248 = vcmask 25624
    %249 = vst.msk [vmem:[#allocation2] sm:$0x3] %vm248, %v247
    %v250 = vld [vmem:[#allocation3] sm:$0x3]
    %v251 = vmul.f32 %v228, %v228
    %v254 = vunpack.c.l.s4 1983009808
    %v255 = vunpack.c.0.s8 %v254
    %v256 = vlaneseq
    %v257 = vshrl.u32 %v256, 7
    %v258 = vsub.s32 %v255, %v257
    %v259 = vrot.slane %v251, %v258
    %v260 = vcombine.high %v259, %v259
    %v263 = vsel %vm94, %v259, 0.0
    %v264 = vsel %vm94, %v260, 0.0
    %v265 = vadd.f32 %v263, %v264
    %266 = vadd.xlane.f32.xlu0 %v265
    %v267 = vpop.xlane.xlu0 %266
    %v268 = vadd.f32 %v250, %v267
    %269 = vst.msk [vmem:[#allocation3] sm:$0x3] %vm248, %v268
    // Predicated region
    $region46: #{tpu_custom_call.1} parent=1 // pred_check
      %p270 = pneg %p71
    $region47: #{tpu_custom_call.1} parent=1 // pred_check_branch
      %272 = sbr.rel (%p270) target = $region49
    $region48: #{tpu_custom_call.1} parent=1 // pred_region
      %v273 = vld [vmem:[#allocation3] sm:$0x3]
      %v274 = vrsqrt.pop %v273
      %v275 = vmul.f32 %v273, %v274
      %vm276 = vcmp.eq.f32.partialorder %v273, inf
      %v277 = vsel %vm276, %v273, %v275
      %vm278 = vcmp.eq.f32.partialorder %v273, 0.0
      %v279 = vand.u32 %v273, 2147483648
      %v280 = vsel %vm278, %v279, %v277
      %v281 = vmax.f32 %v280, 1e-08
      %v282 = vld [vmem:[#allocation4] sm:$0x3]
      %v283 = vrsqrt.pop %v282
      %v284 = vmul.f32 %v282, %v283
      %vm285 = vcmp.eq.f32.partialorder %v282, inf
      %v286 = vsel %vm285, %v282, %v284
      %vm287 = vcmp.eq.f32.partialorder %v282, 0.0
      %v288 = vand.u32 %v282, 2147483648
      %v289 = vsel %vm287, %v288, %v286
      %v290 = vmax.f32 %v289, 1e-08
      %v291 = vld [vmem:[#allocation2] sm:$0x3]
      %293 = vset.pattern.permute.xlu0 0
      %294 = vperm.xlu0 %293, %v290
      %v295 = vpop.permute.xlu0 %294
      %v297 = vmul.f32 %v281, %v295
      %v298 = vrcp.pop %v297
      %v299 = vmul.f32 %v291, %v298
      %v300 = vld [vmem:[#allocation5] sm:$0x3]
      %v301 = vand.u32 2147483647, %v299
      %v302 = vmul.f32 %v300, %v301
      %vm303 = vcmask 25600
      %v304 = vsel %vm303, %v302, 0.0
      %305 = vadd.xlane.f32.xlu0 %v304
      %v306 = vpop.xlane.xlu0 %305
      %v307 = vrot.slane %v306, 4
      %v308 = vadd.f32 %v306, %v307
      %v309 = vrot.slane %v308, 2
      %v310 = vadd.f32 %v308, %v309
      %v311 = vrot.slane %v310, 1
      %v312 = vadd.f32 %v310, %v311
      %s313 = vtos %v312
      %v314 = vstv %s313
      %v315 = vmul.f32 %v314, 0.125
      %vm316 = vcmask 0
      %317 = vst.msk [vmem:[#allocation13] sm:$0x1] %vm316, %v315
    $region49: #{tpu_custom_call.1} parent=1 // pred_fallthru
      _
    // Predicated region
    $region50: #{tpu_custom_call.1} parent=1 // pred_check
      _
    $region51: #{tpu_custom_call.1} parent=1 // pred_check_branch
      %319 = sbr.rel (0) target = $region53
    $region52: #{tpu_custom_call.1} parent=1 // pred_region
      %s321 = ssub.s32 16, 16
      %322 = vsyncadd [#allocation7], %s321
      %s324 = sshll.u32 [#allocation13], 4
      %s325 = int_to_ptr.vmem [resolvable:$true] %s324
      %327 = dma.vmem_to_hbm [thread:$0]  %s325, 16, %s6, [#allocation7]
    $region53: #{tpu_custom_call.1} parent=1 // pred_fallthru
      _
    // Predicated region
    $region54: #{tpu_custom_call.1} parent=1 // pred_check
      _
    $region55: #{tpu_custom_call.1} parent=1 // pred_check_branch
      %329 = sbr.rel (0) target = $region57
    $region56: #{tpu_custom_call.1} parent=1 // pred_region
      %330 = dma.done [#allocation7], 16
    $region57: #{tpu_custom_call.1} parent=1 // pred_fallthru
      _
    %331 = vsyncpa [#allocation6], 1
    %332 = vsyncpa [#allocation9], 1
    %333 = vsyncpa [#allocation12], 1
    %334 = vsyncpa [#allocation7], 1

</llo_original>
